<compile_context>
chip_gen: v7x
topology: tpu7x:2x2x1
jax: 0.10.0
libtpu: 0.0.40
codegen_flags: <defaults>
</compile_context>

<pallas_src>
import math

import jax
import jax.numpy as jnp
from jax.experimental import pallas as pl
from jax.experimental.pallas import tpu as pltpu

_INV_SQRT2 = 1.0 / math.sqrt(2.0)


def _round_up(x, m):
    return ((x + m - 1) // m) * m


def _sublane_multiple(dtype):
    itemsize = jnp.dtype(dtype).itemsize
    if itemsize >= 4:
        return 8
    if itemsize == 2:
        return 16
    return 32


def _vmem_budget_bytes():
    # ~75% of physical VMEM: 96 MiB on v5e/v6e (128 MiB), 48 MiB on v7x (64 MiB).
    try:
        info = pltpu.get_tpu_info()
        cap = getattr(info, "vmem_capacity_bytes", None)
        if cap:
            return int(cap) * 3 // 4
    except Exception:
        pass
    return 48 << 20  # conservative fallback, safe on every generation


def _intermediate_kernel(x_ref, w_ref, b_ref, o_ref):
    # x_ref: [tm, K]  activation rows
    # w_ref: [tn, K]  weight panel in native nn.Linear layout (K lane-dense)
    # b_ref: [1, tn]  bias slice (resident across the inner grid sweep)
    # o_ref: [tm, tn]
    # Contracting ((1,),(1,)) lowers to a single MXU matmul with a
    # transposed-RHS feed (no per-step XLU transpose of the weight panel).
    acc = jax.lax.dot_general(
        x_ref[...],
        w_ref[...],
        dimension_numbers=(((1,), (1,)), ((), ())),
        preferred_element_type=jnp.float32,
    )
    acc = acc + b_ref[...].astype(jnp.float32)
    # Exact GELU (matches PyTorch F.gelu default / transformers "gelu").
    out = 0.5 * acc * (1.0 + jax.lax.erf(acc * _INV_SQRT2))
    o_ref[...] = out.astype(o_ref.dtype)


def deberta_intermediate(x, weight, bias, *, tm=512, tn=None,
                         compute_dtype=None, vmem_limit_bytes=None):
    """y = gelu(x @ weight.T + bias).

    x: [batch, seq, hidden]; weight: [intermediate, hidden]; bias: [intermediate].
    """
    batch, seq, hidden = x.shape
    inter, hidden_w = weight.shape
    assert hidden_w == hidden, "weight must be [intermediate, hidden]"
    M = batch * seq
    out_dtype = x.dtype

    x2 = x.reshape(M, hidden)
    w2 = weight
    if compute_dtype is not None:
        # Optional (e.g. bf16): halves operand HBM traffic and hits the MXU
        # fast path; accumulation stays f32 below.
        x2 = x2.astype(compute_dtype)
        w2 = w2.astype(compute_dtype)
    b2 = bias.reshape(1, inter)

    xb = jnp.dtype(x2.dtype).itemsize
    wb = jnp.dtype(w2.dtype).itemsize
    bb = jnp.dtype(b2.dtype).itemsize
    ob = jnp.dtype(out_dtype).itemsize

    budget = _vmem_budget_bytes() if vmem_limit_bytes is None else int(vmem_limit_bytes)

    # --- Tile selection ------------------------------------------------------
    sub = _sublane_multiple(x2.dtype)
    tm = _round_up(min(tm, _round_up(M, sub)), sub)
    tn_full = _round_up(inter, 128)
    tn = tn_full if tn is None else min(_round_up(tn, 128), tn_full)

    def footprint(tm_, tn_):
        # Double-buffered x/out tiles, weight + bias pipeline buffers (the
        # weight is only *fetched* once per outer j step, but Pallas still
        # allocates two buffers), f32 accumulator + epilogue temporary.
        # TODO(synk): pipeline_mode=pl.Buffered(1) on the weight/bias specs
        # would drop their second buffer and let an even wider panel fit.
        return (2 * tm_ * hidden * xb
                + 2 * tn_ * hidden * wb
                + 2 * tn_ * bb
                + 2 * tm_ * tn_ * ob
                + 2 * tm_ * tn_ * 4)

    # Widest weight panel (fewest x passes over HBM) that fits the budget.
    while footprint(tm, tn) > budget and tn > 128:
        tn = max(128, _round_up(tn // 2, 128))
    while footprint(tm, tn) > budget and tm > sub:
        tm = max(sub, _round_up(tm // 2, sub))

    # j (weight panels) outer, i (row tiles) inner: each weight/bias panel is
    # DMA'd from HBM exactly once and stays resident across the inner i sweep.
    grid = (pl.cdiv(inter, tn), pl.cdiv(M, tm))

    cost = pl.CostEstimate(
        flops=2 * M * hidden * inter,
        bytes_accessed=(M * hidden * xb + inter * hidden * wb
                        + inter * bb + M * inter * ob),
        transcendentals=M * inter,
    )

    out2 = pl.pallas_call(
        _intermediate_kernel,
        out_shape=jax.ShapeDtypeStruct((M, inter), out_dtype),
        grid_spec=pltpu.PrefetchScalarGridSpec(
            num_scalar_prefetch=0,
            grid=grid,
            in_specs=[
                pl.BlockSpec((tm, hidden), lambda j, i: (i, 0)),   # x rows (full K)
                pl.BlockSpec((tn, hidden), lambda j, i: (j, 0)),   # W panel (native layout)
                pl.BlockSpec((1, tn), lambda j, i: (0, j)),        # bias slice (outer axis only)
            ],
            out_specs=pl.BlockSpec((tm, tn), lambda j, i: (i, j)),
        ),
        compiler_params=pltpu.CompilerParams(
            dimension_semantics=("parallel", "parallel"),
            vmem_limit_bytes=int(budget),
        ),
        cost_estimate=cost,
    )(x2, w2, b2)

    return out2.reshape(batch, seq, inter)


def _reference(x, weight, bias):
    y = jnp.einsum("bsh,ih->bsi", x, weight,
                   precision=jax.lax.Precision.HIGHEST) + bias
    return jax.nn.gelu(y, approximate=False)


if __name__ == "__main__":
    key = jax.random.PRNGKey(0)
    fwd = jax.jit(deberta_intermediate)

    # Case 1: small, tile-aligned config consistent with DebertaIntermediate.
    batch, seq, hidden_size, intermediate_size = 2, 8, 32, 128
    kx, kw, kb, key = jax.random.split(key, 4)
    x = jax.random.normal(kx, (batch, seq, hidden_size), dtype=jnp.float32)
    weight = jax.random.normal(
        kw, (intermediate_size, hidden_size), dtype=jnp.float32
    ) * (1.0 / math.sqrt(hidden_size))
    bias = jax.random.normal(kb, (intermediate_size,), dtype=jnp.float32) * 0.01

    out = jax.block_until_ready(fwd(x, weight, bias))
    ref = _reference(x, weight, bias)
    assert out.shape == (batch, seq, intermediate_size)
    assert jnp.allclose(out, ref, atol=1e-4, rtol=1e-4), \
        float(jnp.max(jnp.abs(out - ref)))

    # Case 2: non-tile-aligned shapes exercise the ragged (masked) edge blocks.
    batch2, seq2, hidden2, inter2 = 2, 5, 48, 200
    kx, kw, kb, key = jax.random.split(key, 4)
    x2 = jax.random.normal(kx, (batch2, seq2, hidden2), dtype=jnp.float32)
    w2 = jax.random.normal(kw, (inter2, hidden2), dtype=jnp.float32) * (
        1.0 / math.sqrt(hidden2)
    )
    b2 = jax.random.normal(kb, (inter2,), dtype=jnp.float32) * 0.01

    out2 = jax.block_until_ready(fwd(x2, w2, b2))
    ref2 = _reference(x2, w2, b2)
    assert out2.shape == (batch2, seq2, inter2)
    assert jnp.allclose(out2, ref2, atol=1e-4, rtol=1e-4), \
        float(jnp.max(jnp.abs(out2 - ref2)))

    print("KERNEL_OK")
</pallas_src>

<mosaic_0001>
module attributes {stable_mosaic.version = 11 : i64} {
  func.func @_intermediate_kernel(%arg0: i32, %arg1: i32, %arg2: memref<16x32xf32, #tpu.memory_space<vmem>>, %arg3: memref<128x32xf32, #tpu.memory_space<vmem>>, %arg4: memref<1x128xf32, #tpu.memory_space<vmem>>, %arg5: memref<16x128xf32, #tpu.memory_space<vmem>>) attributes {dimension_semantics = [#tpu.dimension_semantics<parallel>, #tpu.dimension_semantics<parallel>], iteration_bounds = array<i64: 1, 1>, scalar_prefetch = 0 : i64, scratch_operands = 0 : i64, tpu.core_type = #tpu.core_type<tc>, window_params = [{transform_indices = @transform_0, window_bounds = array<i64: 16, 32>}, {transform_indices = @transform_1, window_bounds = array<i64: 128, 32>}, {transform_indices = @transform_2, window_bounds = array<i64: 1, 128>}, {transform_indices = @transform_3, window_bounds = array<i64: 16, 128>}]} {
    %c0 = arith.constant 0 : index
    %c0_0 = arith.constant 0 : index
    %0 = vector.load %arg2[%c0, %c0_0] : memref<16x32xf32, #tpu.memory_space<vmem>>, vector<16x32xf32>
    %c0_1 = arith.constant 0 : index
    %c0_2 = arith.constant 0 : index
    %1 = vector.load %arg3[%c0_1, %c0_2] : memref<128x32xf32, #tpu.memory_space<vmem>>, vector<128x32xf32>
    %cst = arith.constant dense<0.000000e+00> : vector<16x128xf32>
    %2 = tpu.matmul %0, %1, %cst {dimension_numbers = #tpu.dot_dimension_numbers<[1], [1], [0], [0], [0, 0, 1, 0], [], []>} : vector<16x32xf32>, vector<128x32xf32>, vector<16x128xf32> -> vector<16x128xf32>
    %c0_3 = arith.constant 0 : index
    %c0_4 = arith.constant 0 : index
    %3 = vector.load %arg4[%c0_3, %c0_4] : memref<1x128xf32, #tpu.memory_space<vmem>>, vector<1x128xf32>
    %4 = vector.broadcast %3 : vector<1x128xf32> to vector<16x128xf32>
    %5 = arith.addf %2, %4 : vector<16x128xf32>
    %cst_5 = arith.constant 5.000000e-01 : f32
    %6 = vector.broadcast %cst_5 : f32 to vector<16x128xf32>
    %7 = arith.mulf %6, %5 : vector<16x128xf32>
    %cst_6 = arith.constant 0.707106769 : f32
    %8 = vector.broadcast %cst_6 : f32 to vector<16x128xf32>
    %9 = arith.mulf %5, %8 : vector<16x128xf32>
    %10 = math.erf %9 : vector<16x128xf32>
    %cst_7 = arith.constant 1.000000e+00 : f32
    %11 = vector.broadcast %cst_7 : f32 to vector<16x128xf32>
    %12 = arith.addf %11, %10 : vector<16x128xf32>
    %13 = arith.mulf %7, %12 : vector<16x128xf32>
    %c0_8 = arith.constant 0 : index
    %c0_9 = arith.constant 0 : index
    %14 = vector.load %arg5[%c0_8, %c0_9] : memref<16x128xf32, #tpu.memory_space<vmem>>, vector<16x128xf32>
    tpu.vector_store %arg5[%c0_8, %c0_9], %13 {strides = array<i32>} : memref<16x128xf32, #tpu.memory_space<vmem>>, vector<16x128xf32>,
    return
  }
  func.func @transform_0(%arg0: i32, %arg1: i32) -> (i32, i32) {
    %c0_i32 = arith.constant 0 : i32
    %c0_i32_0 = arith.constant 0 : i32
    return %arg1, %c0_i32 : i32, i32
  }
  func.func @transform_1(%arg0: i32, %arg1: i32) -> (i32, i32) {
    %c0_i32 = arith.constant 0 : i32
    %c0_i32_0 = arith.constant 0 : i32
    return %arg0, %c0_i32 : i32, i32
  }
  func.func @transform_2(%arg0: i32, %arg1: i32) -> (i32, i32) {
    %c0_i32 = arith.constant 0 : i32
    %c0_i32_0 = arith.constant 0 : i32
    return %c0_i32, %arg0 : i32, i32
  }
  func.func @transform_3(%arg0: i32, %arg1: i32) -> (i32, i32) {
    %c0_i32 = arith.constant 0 : i32
    return %arg1, %arg0 : i32, i32
  }
}

</mosaic_0001>

<llo_original>
// kernel: deberta_intermediate.1
$region0: #{deberta_intermediate.1}
  #allocation0 [shape = 'u32[]', space=smem, size = 0x4, offset = 0x4, fixed_abs, tag = 'smem constant byte address 0x4 - core index']
  #allocation1 [shape = 'u32[144,128]{1,0:T(1,128)}', space=vmem, size = 0x12000, scoped, tag = 'internal scratch']
  %s0 = inlined_call_operand.vmem [shape: f32[16,32], index: 0, kind: input, shape index: {}]
  %s1 = inlined_call_operand.vmem [shape: f32[128,32], index: 1, kind: input, shape index: {}]
  %s2 = inlined_call_operand.vmem [shape: f32[1,128], index: 2, kind: input, shape index: {}]
  %s3 = inlined_call_operand.hbm [shape: f32[16,128], index: 3, kind: output, shape index: {}]
  %s4 = sld [smem:[#allocation0]]
  $region22: #{deberta_intermediate.1} parent=0
    _
  %s6 = ssub.s32 1, %s4
  %s7 = scalar_select 0, %s6, %s4
  $region1: #{deberta_intermediate.1} parent=0
    #allocation2 [shape = 'u8[8192]{0}', space=vmem, size = 0x2000, scoped, tag = 'output window, operand 0, single buffered']
    #allocation3 [shape = 's32[1]{0}', space=sflag, size = 0x4, scoped, tag = 'scoped memory for deberta_intermediate.1']
    %8 = vsyncpa [#allocation3], 0
    // Predicated region
    $region2: #{deberta_intermediate.1} parent=1 // pred_check
      _
    $region3: #{deberta_intermediate.1} parent=1 // pred_check_branch
      %10 = sbr.rel (0) target = $region5
    $region4: #{deberta_intermediate.1} parent=1 // pred_region
      _
    $region5: #{deberta_intermediate.1} parent=1 // pred_fallthru
      _
    // Predicated region
    $region6: #{deberta_intermediate.1} parent=1 // pred_check
      _
    $region7: #{deberta_intermediate.1} parent=1 // pred_check_branch
      %12 = sbr.rel (0) target = $region9
    $region8: #{deberta_intermediate.1} parent=1 // pred_region
      _
    $region9: #{deberta_intermediate.1} parent=1 // pred_fallthru
      _
    // Predicated region
    $region10: #{deberta_intermediate.1} parent=1 // pred_check
      _
    $region11: #{deberta_intermediate.1} parent=1 // pred_check_branch
      %14 = sbr.rel (0) target = $region13
    $region12: #{deberta_intermediate.1} parent=1 // pred_region
      _
    $region13: #{deberta_intermediate.1} parent=1 // pred_fallthru
      _
    %v15 = vld [vmem:[%s0] sm:$0xff]
    %v16 = vld [vmem:[%s0 + $0x8] sm:$0xff]
    %v17 = vld [vmem:[%s1] sm:$0xff]
    %v18 = vld [vmem:[%s1 + $0x8] sm:$0xff]
    %v19 = vld [vmem:[%s1 + $0x10] sm:$0xff]
    %v20 = vld [vmem:[%s1 + $0x18] sm:$0xff]
    %v21 = vld [vmem:[%s1 + $0x20] sm:$0xff]
    %v22 = vld [vmem:[%s1 + $0x28] sm:$0xff]
    %v23 = vld [vmem:[%s1 + $0x30] sm:$0xff]
    %v24 = vld [vmem:[%s1 + $0x38] sm:$0xff]
    %v25 = vld [vmem:[%s1 + $0x40] sm:$0xff]
    %v26 = vld [vmem:[%s1 + $0x48] sm:$0xff]
    %v27 = vld [vmem:[%s1 + $0x50] sm:$0xff]
    %v28 = vld [vmem:[%s1 + $0x58] sm:$0xff]
    %v29 = vld [vmem:[%s1 + $0x60] sm:$0xff]
    %v30 = vld [vmem:[%s1 + $0x68] sm:$0xff]
    %v31 = vld [vmem:[%s1 + $0x70] sm:$0xff]
    %v32 = vld [vmem:[%s1 + $0x78] sm:$0xff]
    %v33 = vld [vmem:[%s2] sm:$0x1]
    %v35 = vlaneseq
    %v36 = vshrl.u32 %v35, 7
    %v37 = vsub.s32 0, %v36
    %v38 = vrot.slane %v33, %v37
    %vm40 = vcmask 261120
    %v42 = vsel %vm40, %v15, 0
    %v45 = vsel %vm40, %v16, 0
    %v48 = vsel %vm40, %v17, 0
    %v51 = vsel %vm40, %v18, 0
    %v54 = vsel %vm40, %v19, 0
    %v57 = vsel %vm40, %v20, 0
    %v60 = vsel %vm40, %v21, 0
    %v63 = vsel %vm40, %v22, 0
    %v66 = vsel %vm40, %v23, 0
    %v69 = vsel %vm40, %v24, 0
    %v72 = vsel %vm40, %v25, 0
    %v75 = vsel %vm40, %v26, 0
    %v78 = vsel %vm40, %v27, 0
    %v81 = vsel %vm40, %v28, 0
    %v84 = vsel %vm40, %v29, 0
    %v87 = vsel %vm40, %v30, 0
    %v90 = vsel %vm40, %v31, 0
    %v93 = vsel %vm40, %v32, 0
    %95 = vmatprep.subr.mxu0 0.0
    %96 = vmatpush1.xpose.msra.mxu0 %v48
    %97 = vmatprep.subr.mxu0 0.0
    %98 = vmatpush1.xpose.msra.mxu0 %v51
    %99 = vmatprep.subr.mxu0 0.0
    %100 = vmatpush1.xpose.msra.mxu0 %v54
    %101 = vmatprep.subr.mxu0 0.0
    %102 = vmatpush1.xpose.msra.mxu0 %v57
    %103 = vmatprep.subr.mxu0 0.0
    %104 = vmatpush1.xpose.msra.mxu0 %v60
    %105 = vmatprep.subr.mxu0 0.0
    %106 = vmatpush1.xpose.msra.mxu0 %v63
    %107 = vmatprep.subr.mxu0 0.0
    %108 = vmatpush1.xpose.msra.mxu0 %v66
    %109 = vmatprep.subr.mxu0 0.0
    %110 = vmatpush1.xpose.msra.mxu0 %v69
    %111 = vmatprep.subr.mxu0 0.0
    %112 = vmatpush1.xpose.msra.mxu0 %v72
    %113 = vmatprep.subr.mxu0 0.0
    %114 = vmatpush1.xpose.msra.mxu0 %v75
    %115 = vmatprep.subr.mxu0 0.0
    %116 = vmatpush1.xpose.msra.mxu0 %v78
    %117 = vmatprep.subr.mxu0 0.0
    %118 = vmatpush1.xpose.msra.mxu0 %v81
    %119 = vmatprep.subr.mxu0 0.0
    %120 = vmatpush1.xpose.msra.mxu0 %v84
    %121 = vmatprep.subr.mxu0 0.0
    %122 = vmatpush1.xpose.msra.mxu0 %v87
    %123 = vmatprep.subr.mxu0 0.0
    %124 = vmatpush1.xpose.msra.mxu0 %v90
    %125 = vmatprep.subr.mxu0 0.0
    %126 = vmatpush1.xpose.msra.mxu0 %v93
    %127 = vmatprep.subr.mxu0 0.0
    %128 = vmatpush1.xpose.msra.mxu0 0.0
    %129 = vmatprep.subr.mxu0 0.0
    %130 = vmatpush1.xpose.msra.mxu0 0.0
    %131 = vmatprep.subr.mxu0 0.0
    %132 = vmatpush1.xpose.msra.mxu0 0.0
    %133 = vmatprep.subr.mxu0 0.0
    %134 = vmatpush1.xpose.msra.mxu0 0.0
    %135 = vmatprep.subr.mxu0 0.0
    %136 = vmatpush1.xpose.msra.mxu0 0.0
    %137 = vmatprep.subr.mxu0 0.0
    %138 = vmatpush1.xpose.msra.mxu0 0.0
    %139 = vmatprep.subr.mxu0 0.0
    %140 = vmatpush1.xpose.msra.mxu0 0.0
    %141 = vmatprep.subr.mxu0 0.0
    %142 = vmatpush1.xpose.msra.mxu0 0.0
    %143 = vmatprep.subr.mxu0 0.0
    %144 = vmatpush1.xpose.msra.mxu0 0.0
    %145 = vmatprep.subr.mxu0 0.0
    %146 = vmatpush1.xpose.msra.mxu0 0.0
    %147 = vmatprep.subr.mxu0 0.0
    %148 = vmatpush1.xpose.msra.mxu0 0.0
    %149 = vmatprep.subr.mxu0 0.0
    %150 = vmatpush1.xpose.msra.mxu0 0.0
    %151 = vmatprep.subr.mxu0 0.0
    %152 = vmatpush1.xpose.msra.mxu0 0.0
    %153 = vmatprep.subr.mxu0 0.0
    %154 = vmatpush1.xpose.msra.mxu0 0.0
    %155 = vmatprep.subr.mxu0 0.0
    %156 = vmatpush1.xpose.msra.mxu0 0.0
    %157 = vmatprep.subr.mxu0 0.0
    %158 = vmatpush1.xpose.msra.mxu0 0.0
    %159 = vmatprep.mubr.f32.mxu0 0.0
    %160 = vmatmul.mubr.f32.gmra.mrb[0].mxu0 %v42
    %v161 = vpop.f32.mrb[0].mxu0
    %v162 = vadd.f32 %v38, %v161
    %v163 = vpop.f32.mrb[0].mxu0
    %164 = vmatprep.mubr.f32.mxu0 0.0
    %165 = vmatmul.mubr.f32.gmra.mrb[0].mxu0 %v45
    %v166 = vpop.f32.mrb[0].mxu0
    %v167 = vadd.f32 %v38, %v166
    %v168 = vpop.f32.mrb[0].mxu0
    %169 = vdwg.mxu0
    %v170 = vmul.f32 %v162, 0.5
    %v171 = vmul.f32 %v167, 0.5
    %v172 = vmul.f32 %v162, 0.70710677
    %v173 = vmul.f32 %v167, 0.70710677
    %v174 = verf.f32.pop %v172
    %v175 = verf.f32.pop %v173
    %v176 = vadd.f32 %v174, 1.0
    %v177 = vadd.f32 %v175, 1.0
    %v178 = vmul.f32 %v170, %v176
    %v179 = vmul.f32 %v171, %v177
    %180 = vst [vmem:[#allocation2] sm:$0xff] %v178
    %181 = vst [vmem:[#allocation2 + $0x8] sm:$0xff] %v179
    // Predicated region
    $region14: #{deberta_intermediate.1} parent=1 // pred_check
      _
    $region15: #{deberta_intermediate.1} parent=1 // pred_check_branch
      %183 = sbr.rel (0) target = $region17
    $region16: #{deberta_intermediate.1} parent=1 // pred_region
      %s185 = ssub.s32 256, 256
      %186 = vsyncadd [#allocation3], %s185
      %s187 = sshll.u32 [#allocation2], 4
      %s188 = int_to_ptr.vmem [resolvable:$true] %s187
      %193 = dma.vmem_to_hbm [thread:$0]  %s188, 256, %s3, [#allocation3], 128, 128, 8
    $region17: #{deberta_intermediate.1} parent=1 // pred_fallthru
      _
    // Predicated region
    $region18: #{deberta_intermediate.1} parent=1 // pred_check
      _
    $region19: #{deberta_intermediate.1} parent=1 // pred_check_branch
      %195 = sbr.rel (0) target = $region21
    $region20: #{deberta_intermediate.1} parent=1 // pred_region
      %196 = dma.done [#allocation3], 256
    $region21: #{deberta_intermediate.1} parent=1 // pred_fallthru
      _
    %197 = vsyncpa [#allocation3], 1

</llo_original>
